<compile_context>
chip_gen: v7x
topology: tpu7x:2x2x1
jax: 0.10.0
libtpu: 0.0.40
codegen_flags: <defaults>
</compile_context>

<pallas_src>
import functools

import jax
import jax.numpy as jnp
import numpy as np
from jax.experimental import pallas as pl
from jax.experimental.pallas import tpu as pltpu


def _round_up(x, m):
    return (x + m - 1) // m * m


def _ib_kernel(x_ref, p_ref, o_ref, *, N, H, W, Cin, Cmid, Cout, K, residual,
               off_pw, off_pwsh, off_dw, off_dwsh, off_bn, off_bb, bn_g):
    HW = H * W
    pad = K // 2
    f32 = jnp.float32

    x = x_ref[...].astype(f32)                       # (N*Cin, HW), full tile

    outs = []
    for n in range(N):                               # N is tiny & static; unrolled
        xn = x[n * Cin:(n + 1) * Cin]                # (Cin, HW)

        # ---- 1. pointwise 1x1 conv (BN scale folded into weights) ----------
        # Accumulator starts from the folded BN shift (no zeros init).
        h = p_ref[pl.ds(off_pwsh, Cmid), :]                      # (Cmid, HW)
        for c in range(Cin):
            w_c = p_ref[pl.ds(off_pw + c * Cmid, Cmid), :]       # lane-dense weights
            h = h + xn[c:c + 1] * w_c                            # VPU FMA
        h = jnp.maximum(h, 0.0)                                  # (Cmid, HW)

        # ---- 2. depthwise KxK conv (stride 1, 'same') via XLU lane rolls ---
        # Edge-validity masks are pre-multiplied into the weight maps in the
        # wrapper, so circular-roll wrap-around hits zero weights: no per-tap
        # compares or selects here.
        acc = p_ref[pl.ds(off_dwsh, Cmid), :]
        for kh in range(K):
            for kw in range(K):
                d = (kh - pad) * W + (kw - pad)
                shifted = h if d == 0 else pltpu.roll(h, shift=(-d) % HW, axis=1)
                w_t = p_ref[pl.ds(off_dw + (kh * K + kw) * Cmid, Cmid), :]
                acc = acc + shifted * w_t
        h2 = jnp.maximum(acc, 0.0)                               # (Cmid, HW)

        # ---- 3. se: nn.Identity (use_se=False) ------------------------------
        # TODO(synk): SqueezeExcitation branch (use_se=True) not implemented.

        # ---- 4. bottleneck 1x1 conv + bias ----------------------------------
        out_n = p_ref[pl.ds(off_bb, bn_g), :]        # bias (padded to bn_g rows)
        for m in range(Cmid):
            w_m = p_ref[pl.ds(off_bn + m * bn_g, bn_g), :]
            out_n = out_n + h2[m:m + 1] * w_m
        out_n = out_n[:Cout]                         # drop pad rows

        # ---- 5. residual (stride=1, Cin==Cout) ------------------------------
        if residual:
            out_n = out_n + xn
        outs.append(out_n)

    out = outs[0] if N == 1 else jnp.concatenate(outs, axis=0)
    o_ref[...] = out.astype(o_ref.dtype)             # (N*Cout, HW): full, unmasked store


def _pack_params(params, *, H, W, K, Cin, Cmid, Cout):
    """Host-side parameter prep: fold BN scales into conv weights, fold the
    depthwise edge masks into the weight maps, lane-broadcast every per-channel
    vector to the full H*W lane axis, and pack everything into a single
    (P, HW) array so the kernel gets one dense DMA and plain vreg operands."""
    wpw, pw_sc, pw_sh, wdw, dw_sc, dw_sh, wbn, bbn = params
    HW = H * W
    f32 = jnp.float32
    pad = K // 2
    bn_g = _round_up(Cout, 8)        # pad bottleneck groups to sublane-aligned rows

    pw_scale = pw_sc.reshape(Cmid).astype(f32)
    pw_shift = pw_sh.reshape(Cmid).astype(f32)
    dw_scale = dw_sc.reshape(Cmid).astype(f32)
    dw_shift = dw_sh.reshape(Cmid).astype(f32)
    bias = bbn.reshape(Cout).astype(f32)

    # (a) fold BN scales into conv weights
    wpw_f = wpw.astype(f32) * pw_scale[None, :]                        # (Cin, Cmid)
    wdw_f = wdw.reshape(K * K, Cmid).astype(f32) * dw_scale[None, :]   # (K*K, Cmid)

    # (b) fold the 'same'-padding validity masks into the depthwise weight maps
    lin = jnp.arange(HW, dtype=jnp.int32)
    row, col = lin // W, lin % W
    masks = []
    for kh in range(K):
        for kw in range(K):
            dh, dw_ = kh - pad, kw - pad
            masks.append(((row + dh >= 0) & (row + dh < H) &
                          (col + dw_ >= 0) & (col + dw_ < W)).astype(f32))
    valid = jnp.stack(masks, axis=0)                                   # (K*K, HW)

    # (c) lane-broadcast everything and pack into one (P, HW) array
    blk_pw = jnp.broadcast_to(wpw_f.reshape(Cin * Cmid, 1), (Cin * Cmid, HW))
    blk_pwsh = jnp.broadcast_to(pw_shift[:, None], (Cmid, HW))
    blk_dw = (wdw_f[:, :, None] * valid[:, None, :]).reshape(K * K * Cmid, HW)
    blk_dwsh = jnp.broadcast_to(dw_shift[:, None], (Cmid, HW))
    wbn_p = jnp.zeros((Cmid, bn_g), f32).at[:, :Cout].set(wbn.astype(f32))
    blk_bn = jnp.broadcast_to(wbn_p[:, :, None], (Cmid, bn_g, HW)).reshape(Cmid * bn_g, HW)
    bias_p = jnp.zeros((bn_g,), f32).at[:Cout].set(bias)
    blk_bb = jnp.broadcast_to(bias_p[:, None], (bn_g, HW))

    packed = jnp.concatenate(
        [blk_pw, blk_pwsh, blk_dw, blk_dwsh, blk_bn, blk_bb], axis=0)

    off_pw = 0
    off_pwsh = off_pw + Cin * Cmid
    off_dw = off_pwsh + Cmid
    off_dwsh = off_dw + K * K * Cmid
    off_bn = off_dwsh + Cmid
    off_bb = off_bn + Cmid * bn_g
    total = off_bb + bn_g
    total_pad = _round_up(total, 8)
    if total_pad != total:
        packed = jnp.concatenate(
            [packed, jnp.zeros((total_pad - total, HW), f32)], axis=0)

    return packed, (off_pw, off_pwsh, off_dw, off_dwsh, off_bn, off_bb), bn_g


def inverted_bottleneck_pallas(x_nchw, params, *, kernel_size=3, stride=1):
    assert stride == 1, "only stride=1 implemented (residual case)"
    N, Cin, H, W = x_nchw.shape
    HW = H * W
    Cmid = params[0].shape[1]
    Cout = params[6].shape[1]
    K = kernel_size
    residual = (Cin == Cout) and (stride == 1)

    # NCHW -> (N*Cin, HW): free reshape.  Batch x channel packs the sublane
    # axis (8 full sublanes at N=2, C=4), H*W packs the lane axis -> dense
    # input DMA, dense VPU ops, and an unmasked full-tile output store.
    x2 = x_nchw.reshape(N * Cin, HW)

    packed, offs, bn_g = _pack_params(params, H=H, W=W, K=K,
                                      Cin=Cin, Cmid=Cmid, Cout=Cout)
    P = packed.shape[0]

    kernel = functools.partial(
        _ib_kernel, N=N, H=H, W=W, Cin=Cin, Cmid=Cmid, Cout=Cout, K=K,
        residual=residual, off_pw=offs[0], off_pwsh=offs[1], off_dw=offs[2],
        off_dwsh=offs[3], off_bn=offs[4], off_bb=offs[5], bn_g=bn_g)

    out2 = pl.pallas_call(
        kernel,
        out_shape=jax.ShapeDtypeStruct((N * Cout, HW), x_nchw.dtype),
        grid_spec=pltpu.PrefetchScalarGridSpec(
            num_scalar_prefetch=0,
            grid=(1,),      # whole (tiny) problem in one step; on v7x split
                            # over N once N is big enough to feed both TCs.
            in_specs=[
                pl.BlockSpec((N * Cin, HW), lambda i: (0, 0)),
                pl.BlockSpec((P, HW), lambda i: (0, 0)),
            ],
            out_specs=pl.BlockSpec((N * Cout, HW), lambda i: (0, 0)),
        ),
        compiler_params=pltpu.CompilerParams(
            dimension_semantics=("arbitrary",)),
    )(x2, packed)

    return out2.reshape(N, Cout, H, W)   # free reshape back to NCHW


def make_params(key, Cin, Cmid, Cout, K):
    """Deterministic synthetic parameters. BatchNorm (eval mode) is expressed
    as per-channel (scale, shift)."""
    ks = jax.random.split(key, 12)
    eps = 1e-5

    # pointwise conv weight: torch (Cmid, Cin, 1, 1) -> (Cin, Cmid), bias=False
    wpw = jax.random.normal(ks[0], (Cin, Cmid), jnp.float32) * 0.3
    g1 = jax.random.uniform(ks[1], (Cmid,), jnp.float32, 0.5, 1.5)
    b1 = jax.random.normal(ks[2], (Cmid,), jnp.float32) * 0.1
    m1 = jax.random.normal(ks[3], (Cmid,), jnp.float32) * 0.1
    v1 = jax.random.uniform(ks[4], (Cmid,), jnp.float32, 0.5, 1.5)
    pw_sc = (g1 / jnp.sqrt(v1 + eps)).reshape(1, 1, Cmid)
    pw_sh = (b1 - m1 * g1 / jnp.sqrt(v1 + eps)).reshape(1, 1, Cmid)

    # depthwise conv weight: torch (Cmid, 1, K, K) -> (K, K, Cmid), bias=False
    wdw = jax.random.normal(ks[5], (K, K, Cmid), jnp.float32) * 0.3
    g2 = jax.random.uniform(ks[6], (Cmid,), jnp.float32, 0.5, 1.5)
    b2 = jax.random.normal(ks[7], (Cmid,), jnp.float32) * 0.1
    m2 = jax.random.normal(ks[8], (Cmid,), jnp.float32) * 0.1
    v2 = jax.random.uniform(ks[9], (Cmid,), jnp.float32, 0.5, 1.5)
    dw_sc = (g2 / jnp.sqrt(v2 + eps)).reshape(1, 1, Cmid)
    dw_sh = (b2 - m2 * g2 / jnp.sqrt(v2 + eps)).reshape(1, 1, Cmid)

    # bottleneck 1x1 conv: torch (Cout, Cmid, 1, 1) + bias -> (Cmid, Cout)
    wbn = jax.random.normal(ks[10], (Cmid, Cout), jnp.float32) * 0.3
    bbn = (jax.random.normal(ks[11], (Cout,), jnp.float32) * 0.1
           ).reshape(1, 1, Cout)

    return (wpw, pw_sc, pw_sh, wdw, dw_sc, dw_sh, wbn, bbn)


def reference_jax(x_nchw, params, K):
    """Plain-JAX reference (same math, NHWC) for correctness checking."""
    wpw, pw_sc, pw_sh, wdw, dw_sc, dw_sh, wbn, bbn = params
    x = jnp.transpose(x_nchw, (0, 2, 3, 1))
    Cmid = wpw.shape[1]
    h = jnp.einsum('nhwc,cm->nhwm', x, wpw)
    h = jnp.maximum(h * pw_sc + pw_sh, 0.0)
    h2 = jax.lax.conv_general_dilated(
        h, wdw.reshape(K, K, 1, Cmid), window_strides=(1, 1), padding='SAME',
        dimension_numbers=('NHWC', 'HWIO', 'NHWC'), feature_group_count=Cmid)
    h2 = jnp.maximum(h2 * dw_sc + dw_sh, 0.0)
    out = jnp.einsum('nhwm,mo->nhwo', h2, wbn) + bbn
    if out.shape == x.shape:        # mirrors the module's residual condition
        out = out + x
    return jnp.transpose(out, (0, 3, 1, 2))


if __name__ == "__main__":
    N, Cin, H, W = 2, 4, 16, 16
    expansion_ratio, Cout, K = 2, 4, 3
    Cmid = Cin * expansion_ratio

    key = jax.random.PRNGKey(0)
    kx, kp = jax.random.split(key)
    x = jax.random.normal(kx, (N, Cin, H, W), jnp.float32)
    params = make_params(kp, Cin, Cmid, Cout, K)

    out = inverted_bottleneck_pallas(x, params, kernel_size=K, stride=1)
    out = jax.block_until_ready(out)

    ref = jax.block_until_ready(reference_jax(x, params, K))
    np.testing.assert_allclose(np.asarray(out), np.asarray(ref),
                               rtol=1e-4, atol=1e-4)
    print("KERNEL_OK")
</pallas_src>

<mosaic_0001>
module attributes {stable_mosaic.version = 11 : i64} {
  func.func @_ib_kernel(%arg0: i32, %arg1: memref<8x256xf32, #tpu.memory_space<vmem>>, %arg2: memref<192x256xf32, #tpu.memory_space<vmem>>, %arg3: memref<8x256xf32, #tpu.memory_space<vmem>>) attributes {dimension_semantics = [#tpu.dimension_semantics<arbitrary>], iteration_bounds = array<i64: 1>, scalar_prefetch = 0 : i64, scratch_operands = 0 : i64, tpu.core_type = #tpu.core_type<tc>, window_params = [{pipeline_mode = #tpu.pipeline_mode<synchronous>, transform_indices = @transform_0, window_bounds = array<i64: 8, 256>}, {pipeline_mode = #tpu.pipeline_mode<synchronous>, transform_indices = @transform_1, window_bounds = array<i64: 192, 256>}, {pipeline_mode = #tpu.pipeline_mode<synchronous>, transform_indices = @transform_2, window_bounds = array<i64: 8, 256>}]} {
    %c0 = arith.constant 0 : index
    %c0_0 = arith.constant 0 : index
    %0 = vector.load %arg1[%c0, %c0_0] : memref<8x256xf32, #tpu.memory_space<vmem>>, vector<8x256xf32>
    %1 = vector.extract_strided_slice %0 {offsets = [0, 0], sizes = [4, 256], strides = [1, 1]} : vector<8x256xf32> to vector<4x256xf32>
    %c32 = arith.constant 32 : index
    %c0_1 = arith.constant 0 : index
    %2 = vector.load %arg2[%c32, %c0_1] : memref<192x256xf32, #tpu.memory_space<vmem>>, vector<8x256xf32>
    %c0_2 = arith.constant 0 : index
    %c0_3 = arith.constant 0 : index
    %3 = vector.load %arg2[%c0_2, %c0_3] : memref<192x256xf32, #tpu.memory_space<vmem>>, vector<8x256xf32>
    %4 = vector.extract_strided_slice %1 {offsets = [0, 0], sizes = [1, 256], strides = [1, 1]} : vector<4x256xf32> to vector<1x256xf32>
    %5 = vector.broadcast %4 : vector<1x256xf32> to vector<8x256xf32>
    %6 = arith.mulf %5, %3 : vector<8x256xf32>
    %7 = arith.addf %2, %6 : vector<8x256xf32>
    %c8 = arith.constant 8 : index
    %c0_4 = arith.constant 0 : index
    %8 = vector.load %arg2[%c8, %c0_4] : memref<192x256xf32, #tpu.memory_space<vmem>>, vector<8x256xf32>
    %9 = vector.extract_strided_slice %1 {offsets = [1, 0], sizes = [1, 256], strides = [1, 1]} : vector<4x256xf32> to vector<1x256xf32>
    %10 = vector.broadcast %9 : vector<1x256xf32> to vector<8x256xf32>
    %11 = arith.mulf %10, %8 : vector<8x256xf32>
    %12 = arith.addf %7, %11 : vector<8x256xf32>
    %c16 = arith.constant 16 : index
    %c0_5 = arith.constant 0 : index
    %13 = vector.load %arg2[%c16, %c0_5] : memref<192x256xf32, #tpu.memory_space<vmem>>, vector<8x256xf32>
    %14 = vector.extract_strided_slice %1 {offsets = [2, 0], sizes = [1, 256], strides = [1, 1]} : vector<4x256xf32> to vector<1x256xf32>
    %15 = vector.broadcast %14 : vector<1x256xf32> to vector<8x256xf32>
    %16 = arith.mulf %15, %13 : vector<8x256xf32>
    %17 = arith.addf %12, %16 : vector<8x256xf32>
    %c24 = arith.constant 24 : index
    %c0_6 = arith.constant 0 : index
    %18 = vector.load %arg2[%c24, %c0_6] : memref<192x256xf32, #tpu.memory_space<vmem>>, vector<8x256xf32>
    %19 = vector.extract_strided_slice %1 {offsets = [3, 0], sizes = [1, 256], strides = [1, 1]} : vector<4x256xf32> to vector<1x256xf32>
    %20 = vector.broadcast %19 : vector<1x256xf32> to vector<8x256xf32>
    %21 = arith.mulf %20, %18 : vector<8x256xf32>
    %22 = arith.addf %17, %21 : vector<8x256xf32>
    %cst = arith.constant 0.000000e+00 : f32
    %23 = vector.broadcast %cst : f32 to vector<8x256xf32>
    %24 = arith.maximumf %22, %23 : vector<8x256xf32>
    %c112 = arith.constant 112 : index
    %c0_7 = arith.constant 0 : index
    %25 = vector.load %arg2[%c112, %c0_7] : memref<192x256xf32, #tpu.memory_space<vmem>>, vector<8x256xf32>
    %c17_i32 = arith.constant 17 : i32
    %26 = tpu.dynamic_rotate %24 by %c17_i32 dim 1 : vector<8x256xf32>, i32 -> vector<8x256xf32>
    %c40 = arith.constant 40 : index
    %c0_8 = arith.constant 0 : index
    %27 = vector.load %arg2[%c40, %c0_8] : memref<192x256xf32, #tpu.memory_space<vmem>>, vector<8x256xf32>
    %28 = arith.mulf %26, %27 : vector<8x256xf32>
    %29 = arith.addf %25, %28 : vector<8x256xf32>
    %c16_i32 = arith.constant 16 : i32
    %30 = tpu.dynamic_rotate %24 by %c16_i32 dim 1 : vector<8x256xf32>, i32 -> vector<8x256xf32>
    %c48 = arith.constant 48 : index
    %c0_9 = arith.constant 0 : index
    %31 = vector.load %arg2[%c48, %c0_9] : memref<192x256xf32, #tpu.memory_space<vmem>>, vector<8x256xf32>
    %32 = arith.mulf %30, %31 : vector<8x256xf32>
    %33 = arith.addf %29, %32 : vector<8x256xf32>
    %c15_i32 = arith.constant 15 : i32
    %34 = tpu.dynamic_rotate %24 by %c15_i32 dim 1 : vector<8x256xf32>, i32 -> vector<8x256xf32>
    %c56 = arith.constant 56 : index
    %c0_10 = arith.constant 0 : index
    %35 = vector.load %arg2[%c56, %c0_10] : memref<192x256xf32, #tpu.memory_space<vmem>>, vector<8x256xf32>
    %36 = arith.mulf %34, %35 : vector<8x256xf32>
    %37 = arith.addf %33, %36 : vector<8x256xf32>
    %c1_i32 = arith.constant 1 : i32
    %38 = tpu.dynamic_rotate %24 by %c1_i32 dim 1 : vector<8x256xf32>, i32 -> vector<8x256xf32>
    %c64 = arith.constant 64 : index
    %c0_11 = arith.constant 0 : index
    %39 = vector.load %arg2[%c64, %c0_11] : memref<192x256xf32, #tpu.memory_space<vmem>>, vector<8x256xf32>
    %40 = arith.mulf %38, %39 : vector<8x256xf32>
    %41 = arith.addf %37, %40 : vector<8x256xf32>
    %c72 = arith.constant 72 : index
    %c0_12 = arith.constant 0 : index
    %42 = vector.load %arg2[%c72, %c0_12] : memref<192x256xf32, #tpu.memory_space<vmem>>, vector<8x256xf32>
    %43 = arith.mulf %24, %42 : vector<8x256xf32>
    %44 = arith.addf %41, %43 : vector<8x256xf32>
    %c255_i32 = arith.constant 255 : i32
    %45 = tpu.dynamic_rotate %24 by %c255_i32 dim 1 : vector<8x256xf32>, i32 -> vector<8x256xf32>
    %c80 = arith.constant 80 : index
    %c0_13 = arith.constant 0 : index
    %46 = vector.load %arg2[%c80, %c0_13] : memref<192x256xf32, #tpu.memory_space<vmem>>, vector<8x256xf32>
    %47 = arith.mulf %45, %46 : vector<8x256xf32>
    %48 = arith.addf %44, %47 : vector<8x256xf32>
    %c241_i32 = arith.constant 241 : i32
    %49 = tpu.dynamic_rotate %24 by %c241_i32 dim 1 : vector<8x256xf32>, i32 -> vector<8x256xf32>
    %c88 = arith.constant 88 : index
    %c0_14 = arith.constant 0 : index
    %50 = vector.load %arg2[%c88, %c0_14] : memref<192x256xf32, #tpu.memory_space<vmem>>, vector<8x256xf32>
    %51 = arith.mulf %49, %50 : vector<8x256xf32>
    %52 = arith.addf %48, %51 : vector<8x256xf32>
    %c240_i32 = arith.constant 240 : i32
    %53 = tpu.dynamic_rotate %24 by %c240_i32 dim 1 : vector<8x256xf32>, i32 -> vector<8x256xf32>
    %c96 = arith.constant 96 : index
    %c0_15 = arith.constant 0 : index
    %54 = vector.load %arg2[%c96, %c0_15] : memref<192x256xf32, #tpu.memory_space<vmem>>, vector<8x256xf32>
    %55 = arith.mulf %53, %54 : vector<8x256xf32>
    %56 = arith.addf %52, %55 : vector<8x256xf32>
    %c239_i32 = arith.constant 239 : i32
    %57 = tpu.dynamic_rotate %24 by %c239_i32 dim 1 : vector<8x256xf32>, i32 -> vector<8x256xf32>
    %c104 = arith.constant 104 : index
    %c0_16 = arith.constant 0 : index
    %58 = vector.load %arg2[%c104, %c0_16] : memref<192x256xf32, #tpu.memory_space<vmem>>, vector<8x256xf32>
    %59 = arith.mulf %57, %58 : vector<8x256xf32>
    %60 = arith.addf %56, %59 : vector<8x256xf32>
    %cst_17 = arith.constant 0.000000e+00 : f32
    %61 = vector.broadcast %cst_17 : f32 to vector<8x256xf32>
    %62 = arith.maximumf %60, %61 : vector<8x256xf32>
    %c184 = arith.constant 184 : index
    %c0_18 = arith.constant 0 : index
    %63 = vector.load %arg2[%c184, %c0_18] : memref<192x256xf32, #tpu.memory_space<vmem>>, vector<8x256xf32>
    %c120 = arith.constant 120 : index
    %c0_19 = arith.constant 0 : index
    %64 = vector.load %arg2[%c120, %c0_19] : memref<192x256xf32, #tpu.memory_space<vmem>>, vector<8x256xf32>
    %65 = vector.extract_strided_slice %62 {offsets = [0, 0], sizes = [1, 256], strides = [1, 1]} : vector<8x256xf32> to vector<1x256xf32>
    %66 = vector.broadcast %65 : vector<1x256xf32> to vector<8x256xf32>
    %67 = arith.mulf %66, %64 : vector<8x256xf32>
    %68 = arith.addf %63, %67 : vector<8x256xf32>
    %c128 = arith.constant 128 : index
    %c0_20 = arith.constant 0 : index
    %69 = vector.load %arg2[%c128, %c0_20] : memref<192x256xf32, #tpu.memory_space<vmem>>, vector<8x256xf32>
    %70 = vector.extract_strided_slice %62 {offsets = [1, 0], sizes = [1, 256], strides = [1, 1]} : vector<8x256xf32> to vector<1x256xf32>
    %71 = vector.broadcast %70 : vector<1x256xf32> to vector<8x256xf32>
    %72 = arith.mulf %71, %69 : vector<8x256xf32>
    %73 = arith.addf %68, %72 : vector<8x256xf32>
    %c136 = arith.constant 136 : index
    %c0_21 = arith.constant 0 : index
    %74 = vector.load %arg2[%c136, %c0_21] : memref<192x256xf32, #tpu.memory_space<vmem>>, vector<8x256xf32>
    %75 = vector.extract_strided_slice %62 {offsets = [2, 0], sizes = [1, 256], strides = [1, 1]} : vector<8x256xf32> to vector<1x256xf32>
    %76 = vector.broadcast %75 : vector<1x256xf32> to vector<8x256xf32>
    %77 = arith.mulf %76, %74 : vector<8x256xf32>
    %78 = arith.addf %73, %77 : vector<8x256xf32>
    %c144 = arith.constant 144 : index
    %c0_22 = arith.constant 0 : index
    %79 = vector.load %arg2[%c144, %c0_22] : memref<192x256xf32, #tpu.memory_space<vmem>>, vector<8x256xf32>
    %80 = vector.extract_strided_slice %62 {offsets = [3, 0], sizes = [1, 256], strides = [1, 1]} : vector<8x256xf32> to vector<1x256xf32>
    %81 = vector.broadcast %80 : vector<1x256xf32> to vector<8x256xf32>
    %82 = arith.mulf %81, %79 : vector<8x256xf32>
    %83 = arith.addf %78, %82 : vector<8x256xf32>
    %c152 = arith.constant 152 : index
    %c0_23 = arith.constant 0 : index
    %84 = vector.load %arg2[%c152, %c0_23] : memref<192x256xf32, #tpu.memory_space<vmem>>, vector<8x256xf32>
    %85 = vector.extract_strided_slice %62 {offsets = [4, 0], sizes = [1, 256], strides = [1, 1]} : vector<8x256xf32> to vector<1x256xf32>
    %86 = vector.broadcast %85 : vector<1x256xf32> to vector<8x256xf32>
    %87 = arith.mulf %86, %84 : vector<8x256xf32>
    %88 = arith.addf %83, %87 : vector<8x256xf32>
    %c160 = arith.constant 160 : index
    %c0_24 = arith.constant 0 : index
    %89 = vector.load %arg2[%c160, %c0_24] : memref<192x256xf32, #tpu.memory_space<vmem>>, vector<8x256xf32>
    %90 = vector.extract_strided_slice %62 {offsets = [5, 0], sizes = [1, 256], strides = [1, 1]} : vector<8x256xf32> to vector<1x256xf32>
    %91 = vector.broadcast %90 : vector<1x256xf32> to vector<8x256xf32>
    %92 = arith.mulf %91, %89 : vector<8x256xf32>
    %93 = arith.addf %88, %92 : vector<8x256xf32>
    %c168 = arith.constant 168 : index
    %c0_25 = arith.constant 0 : index
    %94 = vector.load %arg2[%c168, %c0_25] : memref<192x256xf32, #tpu.memory_space<vmem>>, vector<8x256xf32>
    %95 = vector.extract_strided_slice %62 {offsets = [6, 0], sizes = [1, 256], strides = [1, 1]} : vector<8x256xf32> to vector<1x256xf32>
    %96 = vector.broadcast %95 : vector<1x256xf32> to vector<8x256xf32>
    %97 = arith.mulf %96, %94 : vector<8x256xf32>
    %98 = arith.addf %93, %97 : vector<8x256xf32>
    %c176 = arith.constant 176 : index
    %c0_26 = arith.constant 0 : index
    %99 = vector.load %arg2[%c176, %c0_26] : memref<192x256xf32, #tpu.memory_space<vmem>>, vector<8x256xf32>
    %100 = vector.extract_strided_slice %62 {offsets = [7, 0], sizes = [1, 256], strides = [1, 1]} : vector<8x256xf32> to vector<1x256xf32>
    %101 = vector.broadcast %100 : vector<1x256xf32> to vector<8x256xf32>
    %102 = arith.mulf %101, %99 : vector<8x256xf32>
    %103 = arith.addf %98, %102 : vector<8x256xf32>
    %104 = vector.extract_strided_slice %103 {offsets = [0, 0], sizes = [4, 256], strides = [1, 1]} : vector<8x256xf32> to vector<4x256xf32>
    %105 = arith.addf %104, %1 : vector<4x256xf32>
    %106 = vector.extract_strided_slice %0 {offsets = [4, 0], sizes = [4, 256], strides = [1, 1]} : vector<8x256xf32> to vector<4x256xf32>
    %c32_27 = arith.constant 32 : index
    %c0_28 = arith.constant 0 : index
    %107 = vector.load %arg2[%c32_27, %c0_28] : memref<192x256xf32, #tpu.memory_space<vmem>>, vector<8x256xf32>
    %c0_29 = arith.constant 0 : index
    %c0_30 = arith.constant 0 : index
    %108 = vector.load %arg2[%c0_29, %c0_30] : memref<192x256xf32, #tpu.memory_space<vmem>>, vector<8x256xf32>
    %109 = vector.extract_strided_slice %106 {offsets = [0, 0], sizes = [1, 256], strides = [1, 1]} : vector<4x256xf32> to vector<1x256xf32>
    %110 = vector.broadcast %109 : vector<1x256xf32> to vector<8x256xf32>
    %111 = arith.mulf %110, %108 : vector<8x256xf32>
    %112 = arith.addf %107, %111 : vector<8x256xf32>
    %c8_31 = arith.constant 8 : index
    %c0_32 = arith.constant 0 : index
    %113 = vector.load %arg2[%c8_31, %c0_32] : memref<192x256xf32, #tpu.memory_space<vmem>>, vector<8x256xf32>
    %114 = vector.extract_strided_slice %106 {offsets = [1, 0], sizes = [1, 256], strides = [1, 1]} : vector<4x256xf32> to vector<1x256xf32>
    %115 = vector.broadcast %114 : vector<1x256xf32> to vector<8x256xf32>
    %116 = arith.mulf %115, %113 : vector<8x256xf32>
    %117 = arith.addf %112, %116 : vector<8x256xf32>
    %c16_33 = arith.constant 16 : index
    %c0_34 = arith.constant 0 : index
    %118 = vector.load %arg2[%c16_33, %c0_34] : memref<192x256xf32, #tpu.memory_space<vmem>>, vector<8x256xf32>
    %119 = vector.extract_strided_slice %106 {offsets = [2, 0], sizes = [1, 256], strides = [1, 1]} : vector<4x256xf32> to vector<1x256xf32>
    %120 = vector.broadcast %119 : vector<1x256xf32> to vector<8x256xf32>
    %121 = arith.mulf %120, %118 : vector<8x256xf32>
    %122 = arith.addf %117, %121 : vector<8x256xf32>
    %c24_35 = arith.constant 24 : index
    %c0_36 = arith.constant 0 : index
    %123 = vector.load %arg2[%c24_35, %c0_36] : memref<192x256xf32, #tpu.memory_space<vmem>>, vector<8x256xf32>
    %124 = vector.extract_strided_slice %106 {offsets = [3, 0], sizes = [1, 256], strides = [1, 1]} : vector<4x256xf32> to vector<1x256xf32>
    %125 = vector.broadcast %124 : vector<1x256xf32> to vector<8x256xf32>
    %126 = arith.mulf %125, %123 : vector<8x256xf32>
    %127 = arith.addf %122, %126 : vector<8x256xf32>
    %cst_37 = arith.constant 0.000000e+00 : f32
    %128 = vector.broadcast %cst_37 : f32 to vector<8x256xf32>
    %129 = arith.maximumf %127, %128 : vector<8x256xf32>
    %c112_38 = arith.constant 112 : index
    %c0_39 = arith.constant 0 : index
    %130 = vector.load %arg2[%c112_38, %c0_39] : memref<192x256xf32, #tpu.memory_space<vmem>>, vector<8x256xf32>
    %c17_i32_40 = arith.constant 17 : i32
    %131 = tpu.dynamic_rotate %129 by %c17_i32_40 dim 1 : vector<8x256xf32>, i32 -> vector<8x256xf32>
    %c40_41 = arith.constant 40 : index
    %c0_42 = arith.constant 0 : index
    %132 = vector.load %arg2[%c40_41, %c0_42] : memref<192x256xf32, #tpu.memory_space<vmem>>, vector<8x256xf32>
    %133 = arith.mulf %131, %132 : vector<8x256xf32>
    %134 = arith.addf %130, %133 : vector<8x256xf32>
    %c16_i32_43 = arith.constant 16 : i32
    %135 = tpu.dynamic_rotate %129 by %c16_i32_43 dim 1 : vector<8x256xf32>, i32 -> vector<8x256xf32>
    %c48_44 = arith.constant 48 : index
    %c0_45 = arith.constant 0 : index
    %136 = vector.load %arg2[%c48_44, %c0_45] : memref<192x256xf32, #tpu.memory_space<vmem>>, vector<8x256xf32>
    %137 = arith.mulf %135, %136 : vector<8x256xf32>
    %138 = arith.addf %134, %137 : vector<8x256xf32>
    %c15_i32_46 = arith.constant 15 : i32
    %139 = tpu.dynamic_rotate %129 by %c15_i32_46 dim 1 : vector<8x256xf32>, i32 -> vector<8x256xf32>
    %c56_47 = arith.constant 56 : index
    %c0_48 = arith.constant 0 : index
    %140 = vector.load %arg2[%c56_47, %c0_48] : memref<192x256xf32, #tpu.memory_space<vmem>>, vector<8x256xf32>
    %141 = arith.mulf %139, %140 : vector<8x256xf32>
    %142 = arith.addf %138, %141 : vector<8x256xf32>
    %c1_i32_49 = arith.constant 1 : i32
    %143 = tpu.dynamic_rotate %129 by %c1_i32_49 dim 1 : vector<8x256xf32>, i32 -> vector<8x256xf32>
    %c64_50 = arith.constant 64 : index
    %c0_51 = arith.constant 0 : index
    %144 = vector.load %arg2[%c64_50, %c0_51] : memref<192x256xf32, #tpu.memory_space<vmem>>, vector<8x256xf32>
    %145 = arith.mulf %143, %144 : vector<8x256xf32>
    %146 = arith.addf %142, %145 : vector<8x256xf32>
    %c72_52 = arith.constant 72 : index
    %c0_53 = arith.constant 0 : index
    %147 = vector.load %arg2[%c72_52, %c0_53] : memref<192x256xf32, #tpu.memory_space<vmem>>, vector<8x256xf32>
    %148 = arith.mulf %129, %147 : vector<8x256xf32>
    %149 = arith.addf %146, %148 : vector<8x256xf32>
    %c255_i32_54 = arith.constant 255 : i32
    %150 = tpu.dynamic_rotate %129 by %c255_i32_54 dim 1 : vector<8x256xf32>, i32 -> vector<8x256xf32>
    %c80_55 = arith.constant 80 : index
    %c0_56 = arith.constant 0 : index
    %151 = vector.load %arg2[%c80_55, %c0_56] : memref<192x256xf32, #tpu.memory_space<vmem>>, vector<8x256xf32>
    %152 = arith.mulf %150, %151 : vector<8x256xf32>
    %153 = arith.addf %149, %152 : vector<8x256xf32>
    %c241_i32_57 = arith.constant 241 : i32
    %154 = tpu.dynamic_rotate %129 by %c241_i32_57 dim 1 : vector<8x256xf32>, i32 -> vector<8x256xf32>
    %c88_58 = arith.constant 88 : index
    %c0_59 = arith.constant 0 : index
    %155 = vector.load %arg2[%c88_58, %c0_59] : memref<192x256xf32, #tpu.memory_space<vmem>>, vector<8x256xf32>
    %156 = arith.mulf %154, %155 : vector<8x256xf32>
    %157 = arith.addf %153, %156 : vector<8x256xf32>
    %c240_i32_60 = arith.constant 240 : i32
    %158 = tpu.dynamic_rotate %129 by %c240_i32_60 dim 1 : vector<8x256xf32>, i32 -> vector<8x256xf32>
    %c96_61 = arith.constant 96 : index
    %c0_62 = arith.constant 0 : index
    %159 = vector.load %arg2[%c96_61, %c0_62] : memref<192x256xf32, #tpu.memory_space<vmem>>, vector<8x256xf32>
    %160 = arith.mulf %158, %159 : vector<8x256xf32>
    %161 = arith.addf %157, %160 : vector<8x256xf32>
    %c239_i32_63 = arith.constant 239 : i32
    %162 = tpu.dynamic_rotate %129 by %c239_i32_63 dim 1 : vector<8x256xf32>, i32 -> vector<8x256xf32>
    %c104_64 = arith.constant 104 : index
    %c0_65 = arith.constant 0 : index
    %163 = vector.load %arg2[%c104_64, %c0_65] : memref<192x256xf32, #tpu.memory_space<vmem>>, vector<8x256xf32>
    %164 = arith.mulf %162, %163 : vector<8x256xf32>
    %165 = arith.addf %161, %164 : vector<8x256xf32>
    %cst_66 = arith.constant 0.000000e+00 : f32
    %166 = vector.broadcast %cst_66 : f32 to vector<8x256xf32>
    %167 = arith.maximumf %165, %166 : vector<8x256xf32>
    %c184_67 = arith.constant 184 : index
    %c0_68 = arith.constant 0 : index
    %168 = vector.load %arg2[%c184_67, %c0_68] : memref<192x256xf32, #tpu.memory_space<vmem>>, vector<8x256xf32>
    %c120_69 = arith.constant 120 : index
    %c0_70 = arith.constant 0 : index
    %169 = vector.load %arg2[%c120_69, %c0_70] : memref<192x256xf32, #tpu.memory_space<vmem>>, vector<8x256xf32>
    %170 = vector.extract_strided_slice %167 {offsets = [0, 0], sizes = [1, 256], strides = [1, 1]} : vector<8x256xf32> to vector<1x256xf32>
    %171 = vector.broadcast %170 : vector<1x256xf32> to vector<8x256xf32>
    %172 = arith.mulf %171, %169 : vector<8x256xf32>
    %173 = arith.addf %168, %172 : vector<8x256xf32>
    %c128_71 = arith.constant 128 : index
    %c0_72 = arith.constant 0 : index
    %174 = vector.load %arg2[%c128_71, %c0_72] : memref<192x256xf32, #tpu.memory_space<vmem>>, vector<8x256xf32>
    %175 = vector.extract_strided_slice %167 {offsets = [1, 0], sizes = [1, 256], strides = [1, 1]} : vector<8x256xf32> to vector<1x256xf32>
    %176 = vector.broadcast %175 : vector<1x256xf32> to vector<8x256xf32>
    %177 = arith.mulf %176, %174 : vector<8x256xf32>
    %178 = arith.addf %173, %177 : vector<8x256xf32>
    %c136_73 = arith.constant 136 : index
    %c0_74 = arith.constant 0 : index
    %179 = vector.load %arg2[%c136_73, %c0_74] : memref<192x256xf32, #tpu.memory_space<vmem>>, vector<8x256xf32>
    %180 = vector.extract_strided_slice %167 {offsets = [2, 0], sizes = [1, 256], strides = [1, 1]} : vector<8x256xf32> to vector<1x256xf32>
    %181 = vector.broadcast %180 : vector<1x256xf32> to vector<8x256xf32>
    %182 = arith.mulf %181, %179 : vector<8x256xf32>
    %183 = arith.addf %178, %182 : vector<8x256xf32>
    %c144_75 = arith.constant 144 : index
    %c0_76 = arith.constant 0 : index
    %184 = vector.load %arg2[%c144_75, %c0_76] : memref<192x256xf32, #tpu.memory_space<vmem>>, vector<8x256xf32>
    %185 = vector.extract_strided_slice %167 {offsets = [3, 0], sizes = [1, 256], strides = [1, 1]} : vector<8x256xf32> to vector<1x256xf32>
    %186 = vector.broadcast %185 : vector<1x256xf32> to vector<8x256xf32>
    %187 = arith.mulf %186, %184 : vector<8x256xf32>
    %188 = arith.addf %183, %187 : vector<8x256xf32>
    %c152_77 = arith.constant 152 : index
    %c0_78 = arith.constant 0 : index
    %189 = vector.load %arg2[%c152_77, %c0_78] : memref<192x256xf32, #tpu.memory_space<vmem>>, vector<8x256xf32>
    %190 = vector.extract_strided_slice %167 {offsets = [4, 0], sizes = [1, 256], strides = [1, 1]} : vector<8x256xf32> to vector<1x256xf32>
    %191 = vector.broadcast %190 : vector<1x256xf32> to vector<8x256xf32>
    %192 = arith.mulf %191, %189 : vector<8x256xf32>
    %193 = arith.addf %188, %192 : vector<8x256xf32>
    %c160_79 = arith.constant 160 : index
    %c0_80 = arith.constant 0 : index
    %194 = vector.load %arg2[%c160_79, %c0_80] : memref<192x256xf32, #tpu.memory_space<vmem>>, vector<8x256xf32>
    %195 = vector.extract_strided_slice %167 {offsets = [5, 0], sizes = [1, 256], strides = [1, 1]} : vector<8x256xf32> to vector<1x256xf32>
    %196 = vector.broadcast %195 : vector<1x256xf32> to vector<8x256xf32>
    %197 = arith.mulf %196, %194 : vector<8x256xf32>
    %198 = arith.addf %193, %197 : vector<8x256xf32>
    %c168_81 = arith.constant 168 : index
    %c0_82 = arith.constant 0 : index
    %199 = vector.load %arg2[%c168_81, %c0_82] : memref<192x256xf32, #tpu.memory_space<vmem>>, vector<8x256xf32>
    %200 = vector.extract_strided_slice %167 {offsets = [6, 0], sizes = [1, 256], strides = [1, 1]} : vector<8x256xf32> to vector<1x256xf32>
    %201 = vector.broadcast %200 : vector<1x256xf32> to vector<8x256xf32>
    %202 = arith.mulf %201, %199 : vector<8x256xf32>
    %203 = arith.addf %198, %202 : vector<8x256xf32>
    %c176_83 = arith.constant 176 : index
    %c0_84 = arith.constant 0 : index
    %204 = vector.load %arg2[%c176_83, %c0_84] : memref<192x256xf32, #tpu.memory_space<vmem>>, vector<8x256xf32>
    %205 = vector.extract_strided_slice %167 {offsets = [7, 0], sizes = [1, 256], strides = [1, 1]} : vector<8x256xf32> to vector<1x256xf32>
    %206 = vector.broadcast %205 : vector<1x256xf32> to vector<8x256xf32>
    %207 = arith.mulf %206, %204 : vector<8x256xf32>
    %208 = arith.addf %203, %207 : vector<8x256xf32>
    %209 = vector.extract_strided_slice %208 {offsets = [0, 0], sizes = [4, 256], strides = [1, 1]} : vector<8x256xf32> to vector<4x256xf32>
    %210 = arith.addf %209, %106 : vector<4x256xf32>
    %211 = tpu.concatenate %105, %210 in 0 : vector<4x256xf32>, vector<4x256xf32> -> vector<8x256xf32>
    %c0_85 = arith.constant 0 : index
    %c0_86 = arith.constant 0 : index
    %212 = vector.load %arg3[%c0_85, %c0_86] : memref<8x256xf32, #tpu.memory_space<vmem>>, vector<8x256xf32>
    tpu.vector_store %arg3[%c0_85, %c0_86], %211 {strides = array<i32>} : memref<8x256xf32, #tpu.memory_space<vmem>>, vector<8x256xf32>,
    return
  }
  func.func @transform_0(%arg0: i32) -> (i32, i32) {
    %c0_i32 = arith.constant 0 : i32
    %c0_i32_0 = arith.constant 0 : i32
    %c0_i32_1 = arith.constant 0 : i32
    return %c0_i32, %c0_i32_0 : i32, i32
  }
  func.func @transform_1(%arg0: i32) -> (i32, i32) {
    %c0_i32 = arith.constant 0 : i32
    %c0_i32_0 = arith.constant 0 : i32
    %c0_i32_1 = arith.constant 0 : i32
    return %c0_i32, %c0_i32_0 : i32, i32
  }
  func.func @transform_2(%arg0: i32) -> (i32, i32) {
    %c0_i32 = arith.constant 0 : i32
    %c0_i32_0 = arith.constant 0 : i32
    %c0_i32_1 = arith.constant 0 : i32
    return %c0_i32, %c0_i32_0 : i32, i32
  }
}

</mosaic_0001>

<llo_original>
// kernel: tpu_custom_call.1
$region0: #{tpu_custom_call.1}
  #allocation0 [shape = 'u32[]', space=smem, size = 0x4, offset = 0x4, fixed_abs, tag = 'smem constant byte address 0x4 - core index']
  #allocation1 [shape = 'u32[144,128]{1,0:T(1,128)}', space=vmem, size = 0x12000, scoped, tag = 'internal scratch']
  %s0 = inlined_call_operand.hbm [shape: f32[8,256], index: 0, kind: input, shape index: {}]
  %s1 = inlined_call_operand.hbm [shape: f32[192,256], index: 1, kind: input, shape index: {}]
  %s2 = inlined_call_operand.hbm [shape: f32[8,256], index: 2, kind: output, shape index: {}]
  %s3 = sld [smem:[#allocation0]]
  $region26: #{tpu_custom_call.1} parent=0
    _
  %s5 = ssub.s32 1, %s3
  %s6 = scalar_select 0, %s5, %s3
  $region1: #{tpu_custom_call.1} parent=0
    #allocation2 [shape = 'u8[8192]{0}', space=vmem, size = 0x2000, scoped, tag = 'input window, operand 0, single buffered']
    #allocation3 [shape = 's32[1]{0}', space=sflag, size = 0x4, scoped, tag = 'scoped memory for tpu_custom_call.1']
    #allocation4 [shape = 's32[1]{0}', space=sflag, size = 0x4, scoped, tag = 'scoped memory for tpu_custom_call.1']
    #allocation5 [shape = 'u8[196608]{0}', space=vmem, size = 0x30000, scoped, tag = 'input window, operand 1, single buffered']
    #allocation6 [shape = 's32[1]{0}', space=sflag, size = 0x4, scoped, tag = 'scoped memory for tpu_custom_call.1']
    #allocation7 [shape = 'u8[8192]{0}', space=vmem, size = 0x2000, scoped, tag = 'output window, operand 0, single buffered']
    %7 = vsyncpa [#allocation3], 0
    %8 = vsyncpa [#allocation6], 0
    %9 = vsyncpa [#allocation4], 0
    // Predicated region
    $region2: #{tpu_custom_call.1} parent=1 // pred_check
      _
    $region3: #{tpu_custom_call.1} parent=1 // pred_check_branch
      %11 = sbr.rel (0) target = $region5
    $region4: #{tpu_custom_call.1} parent=1 // pred_region
      %s13 = ssub.s32 256, 256
      %14 = vsyncadd [#allocation3], %s13
      %s16 = sshll.u32 [#allocation2], 4
      %s17 = int_to_ptr.vmem [resolvable:$true] %s16
      %19 = dma.hbm_to_vmem [thread:$0]  %s0, 256, %s17, [#allocation3]
    $region5: #{tpu_custom_call.1} parent=1 // pred_fallthru
      _
    // Predicated region
    $region6: #{tpu_custom_call.1} parent=1 // pred_check
      _
    $region7: #{tpu_custom_call.1} parent=1 // pred_check_branch
      %21 = sbr.rel (0) target = $region9
    $region8: #{tpu_custom_call.1} parent=1 // pred_region
      %s23 = ssub.s32 6144, 6144
      %24 = vsyncadd [#allocation6], %s23
      %s25 = sshll.u32 [#allocation5], 4
      %s26 = int_to_ptr.vmem [resolvable:$true] %s25
      %31 = dma.hbm_to_vmem [thread:$0]  %s1, 6144, %s26, [#allocation6], 256, 256, 16
    $region9: #{tpu_custom_call.1} parent=1 // pred_fallthru
      _
    // Predicated region
    $region10: #{tpu_custom_call.1} parent=1 // pred_check
      _
    $region11: #{tpu_custom_call.1} parent=1 // pred_check_branch
      %33 = sbr.rel (0) target = $region13
    $region12: #{tpu_custom_call.1} parent=1 // pred_region
      %34 = dma.done [#allocation3], 256
    $region13: #{tpu_custom_call.1} parent=1 // pred_fallthru
      _
    // Predicated region
    $region14: #{tpu_custom_call.1} parent=1 // pred_check
      _
    $region15: #{tpu_custom_call.1} parent=1 // pred_check_branch
      %36 = sbr.rel (0) target = $region17
    $region16: #{tpu_custom_call.1} parent=1 // pred_region
      %37 = dma.done [#allocation6], 6144
    $region17: #{tpu_custom_call.1} parent=1 // pred_fallthru
      _
    %v38 = vld [vmem:[#allocation2] sm:$0xff]
    %v39 = vld [vmem:[#allocation2 + $0x8] sm:$0xff]
    %v40 = vld [vmem:[#allocation5 + $0x40] sm:$0xff]
    %v41 = vld [vmem:[#allocation5 + $0x48] sm:$0xff]
    %v42 = vld [vmem:[#allocation5] sm:$0xff]
    %v43 = vld [vmem:[#allocation5 + $0x8] sm:$0xff]
    %v44 = vlaneseq
    %v45 = vshrl.u32 %v44, 7
    %v46 = vsub.s32 0, %v45
    %v47 = vrot.slane %v38, %v46
    %v48 = vlaneseq
    %v49 = vshrl.u32 %v48, 7
    %v50 = vsub.s32 0, %v49
    %v51 = vrot.slane %v39, %v50
    %v52 = vmul.f32 %v47, %v42
    %v53 = vmul.f32 %v51, %v43
    %v54 = vadd.f32 %v40, %v52
    %v55 = vadd.f32 %v41, %v53
    %v56 = vld [vmem:[#allocation5 + $0x10] sm:$0xff]
    %v57 = vld [vmem:[#allocation5 + $0x18] sm:$0xff]
    %v58 = vlaneseq
    %v59 = vshrl.u32 %v58, 7
    %v60 = vsub.s32 1, %v59
    %v61 = vrot.slane %v38, %v60
    %v62 = vlaneseq
    %v63 = vshrl.u32 %v62, 7
    %v64 = vsub.s32 1, %v63
    %v65 = vrot.slane %v39, %v64
    %v66 = vmul.f32 %v61, %v56
    %v67 = vmul.f32 %v65, %v57
    %v68 = vadd.f32 %v54, %v66
    %v69 = vadd.f32 %v55, %v67
    %v70 = vld [vmem:[#allocation5 + $0x20] sm:$0xff]
    %v71 = vld [vmem:[#allocation5 + $0x28] sm:$0xff]
    %v72 = vlaneseq
    %v73 = vshrl.u32 %v72, 7
    %v74 = vsub.s32 2, %v73
    %v75 = vrot.slane %v38, %v74
    %v76 = vlaneseq
    %v77 = vshrl.u32 %v76, 7
    %v78 = vsub.s32 2, %v77
    %v79 = vrot.slane %v39, %v78
    %v80 = vmul.f32 %v75, %v70
    %v81 = vmul.f32 %v79, %v71
    %v82 = vadd.f32 %v68, %v80
    %v83 = vadd.f32 %v69, %v81
    %v84 = vld [vmem:[#allocation5 + $0x30] sm:$0xff]
    %v85 = vld [vmem:[#allocation5 + $0x38] sm:$0xff]
    %v86 = vlaneseq
    %v87 = vshrl.u32 %v86, 7
    %v88 = vsub.s32 3, %v87
    %v89 = vrot.slane %v38, %v88
    %v90 = vlaneseq
    %v91 = vshrl.u32 %v90, 7
    %v92 = vsub.s32 3, %v91
    %v93 = vrot.slane %v39, %v92
    %v94 = vmul.f32 %v89, %v84
    %v95 = vmul.f32 %v93, %v85
    %v96 = vadd.f32 %v82, %v94
    %v97 = vadd.f32 %v83, %v95
    %v98 = vmax.f32 %v96, 0.0
    %v99 = vmax.f32 %v97, 0.0
    %v100 = vld [vmem:[#allocation5 + $0xe0] sm:$0xff]
    %v101 = vld [vmem:[#allocation5 + $0xe8] sm:$0xff]
    %102 = vrot.lane.b32.xlu0 %v98, 17
    %v103 = vpop.permute.xlu0 %102
    %104 = vrot.lane.b32.xlu0 %v99, 17
    %v105 = vpop.permute.xlu0 %104
    %v106 = vlaneseq
    %v107 = vand.u32 %v106, 127
    %vm108 = vcmp.lt.s32.totalorder %v107, 17
    %v109 = vsel %vm108, %v103, %v105
    %v110 = vsel %vm108, %v105, %v103
    %v111 = vld [vmem:[#allocation5 + $0x50] sm:$0xff]
    %v112 = vld [vmem:[#allocation5 + $0x58] sm:$0xff]
    %v113 = vmul.f32 %v110, %v111
    %v114 = vmul.f32 %v109, %v112
    %v115 = vadd.f32 %v100, %v113
    %v116 = vadd.f32 %v101, %v114
    %117 = vrot.lane.b32.xlu0 %v98, 16
    %v118 = vpop.permute.xlu0 %117
    %119 = vrot.lane.b32.xlu0 %v99, 16
    %v120 = vpop.permute.xlu0 %119
    %vm121 = vcmp.lt.s32.totalorder %v107, 16
    %v122 = vsel %vm121, %v118, %v120
    %v123 = vsel %vm121, %v120, %v118
    %v124 = vld [vmem:[#allocation5 + $0x60] sm:$0xff]
    %v125 = vld [vmem:[#allocation5 + $0x68] sm:$0xff]
    %v126 = vmul.f32 %v123, %v124
    %v127 = vmul.f32 %v122, %v125
    %v128 = vadd.f32 %v115, %v126
    %v129 = vadd.f32 %v116, %v127
    %130 = vrot.lane.b32.xlu0 %v98, 15
    %v131 = vpop.permute.xlu0 %130
    %132 = vrot.lane.b32.xlu0 %v99, 15
    %v133 = vpop.permute.xlu0 %132
    %vm134 = vcmp.lt.s32.totalorder %v107, 15
    %v135 = vsel %vm134, %v131, %v133
    %v136 = vsel %vm134, %v133, %v131
    %v137 = vld [vmem:[#allocation5 + $0x70] sm:$0xff]
    %v138 = vld [vmem:[#allocation5 + $0x78] sm:$0xff]
    %v139 = vmul.f32 %v136, %v137
    %v140 = vmul.f32 %v135, %v138
    %v141 = vadd.f32 %v128, %v139
    %v142 = vadd.f32 %v129, %v140
    %143 = vrot.lane.b32.xlu0 %v98, 1
    %v144 = vpop.permute.xlu0 %143
    %145 = vrot.lane.b32.xlu0 %v99, 1
    %v146 = vpop.permute.xlu0 %145
    %vm147 = vcmp.lt.s32.totalorder %v107, 1
    %v148 = vsel %vm147, %v144, %v146
    %v149 = vsel %vm147, %v146, %v144
    %v150 = vld [vmem:[#allocation5 + $0x80] sm:$0xff]
    %v151 = vld [vmem:[#allocation5 + $0x88] sm:$0xff]
    %v152 = vmul.f32 %v149, %v150
    %v153 = vmul.f32 %v148, %v151
    %v154 = vadd.f32 %v141, %v152
    %v155 = vadd.f32 %v142, %v153
    %v156 = vld [vmem:[#allocation5 + $0x90] sm:$0xff]
    %v157 = vld [vmem:[#allocation5 + $0x98] sm:$0xff]
    %v158 = vmul.f32 %v98, %v156
    %v159 = vmul.f32 %v99, %v157
    %v160 = vadd.f32 %v154, %v158
    %v161 = vadd.f32 %v155, %v159
    %162 = vrot.lane.b32.xlu0 %v98, 127
    %v163 = vpop.permute.xlu0 %162
    %164 = vrot.lane.b32.xlu0 %v99, 127
    %v165 = vpop.permute.xlu0 %164
    %vm166 = vcmp.lt.s32.totalorder %v107, 127
    %v167 = vsel %vm166, %v163, %v165
    %v168 = vsel %vm166, %v165, %v163
    %v169 = vld [vmem:[#allocation5 + $0xa0] sm:$0xff]
    %v170 = vld [vmem:[#allocation5 + $0xa8] sm:$0xff]
    %v171 = vmul.f32 %v167, %v169
    %v172 = vmul.f32 %v168, %v170
    %v173 = vadd.f32 %v160, %v171
    %v174 = vadd.f32 %v161, %v172
    %175 = vrot.lane.b32.xlu0 %v98, 113
    %v176 = vpop.permute.xlu0 %175
    %177 = vrot.lane.b32.xlu0 %v99, 113
    %v178 = vpop.permute.xlu0 %177
    %vm179 = vcmp.lt.s32.totalorder %v107, 113
    %v180 = vsel %vm179, %v176, %v178
    %v181 = vsel %vm179, %v178, %v176
    %v182 = vld [vmem:[#allocation5 + $0xb0] sm:$0xff]
    %v183 = vld [vmem:[#allocation5 + $0xb8] sm:$0xff]
    %v184 = vmul.f32 %v180, %v182
    %v185 = vmul.f32 %v181, %v183
    %v186 = vadd.f32 %v173, %v184
    %v187 = vadd.f32 %v174, %v185
    %188 = vrot.lane.b32.xlu0 %v98, 112
    %v189 = vpop.permute.xlu0 %188
    %190 = vrot.lane.b32.xlu0 %v99, 112
    %v191 = vpop.permute.xlu0 %190
    %vm192 = vcmp.lt.s32.totalorder %v107, 112
    %v193 = vsel %vm192, %v189, %v191
    %v194 = vsel %vm192, %v191, %v189
    %v195 = vld [vmem:[#allocation5 + $0xc0] sm:$0xff]
    %v196 = vld [vmem:[#allocation5 + $0xc8] sm:$0xff]
    %v197 = vmul.f32 %v193, %v195
    %v198 = vmul.f32 %v194, %v196
    %v199 = vadd.f32 %v186, %v197
    %v200 = vadd.f32 %v187, %v198
    %201 = vrot.lane.b32.xlu0 %v98, 111
    %v202 = vpop.permute.xlu0 %201
    %203 = vrot.lane.b32.xlu0 %v99, 111
    %v204 = vpop.permute.xlu0 %203
    %vm205 = vcmp.lt.s32.totalorder %v107, 111
    %v206 = vsel %vm205, %v202, %v204
    %v207 = vsel %vm205, %v204, %v202
    %v208 = vld [vmem:[#allocation5 + $0xd0] sm:$0xff]
    %v209 = vld [vmem:[#allocation5 + $0xd8] sm:$0xff]
    %v210 = vmul.f32 %v206, %v208
    %v211 = vmul.f32 %v207, %v209
    %v212 = vadd.f32 %v199, %v210
    %v213 = vadd.f32 %v200, %v211
    %v214 = vmax.f32 %v212, 0.0
    %v215 = vmax.f32 %v213, 0.0
    %v216 = vld [vmem:[#allocation5 + $0x170] sm:$0xff]
    %v217 = vld [vmem:[#allocation5 + $0x178] sm:$0xff]
    %v218 = vld [vmem:[#allocation5 + $0xf0] sm:$0xff]
    %v219 = vld [vmem:[#allocation5 + $0xf8] sm:$0xff]
    %v220 = vlaneseq
    %v221 = vshrl.u32 %v220, 7
    %v222 = vsub.s32 0, %v221
    %v223 = vrot.slane %v214, %v222
    %v224 = vlaneseq
    %v225 = vshrl.u32 %v224, 7
    %v226 = vsub.s32 0, %v225
    %v227 = vrot.slane %v215, %v226
    %v228 = vmul.f32 %v223, %v218
    %v229 = vmul.f32 %v227, %v219
    %v230 = vadd.f32 %v216, %v228
    %v231 = vadd.f32 %v217, %v229
    %v232 = vld [vmem:[#allocation5 + $0x100] sm:$0xff]
    %v233 = vld [vmem:[#allocation5 + $0x108] sm:$0xff]
    %v234 = vlaneseq
    %v235 = vshrl.u32 %v234, 7
    %v236 = vsub.s32 1, %v235
    %v237 = vrot.slane %v214, %v236
    %v238 = vlaneseq
    %v239 = vshrl.u32 %v238, 7
    %v240 = vsub.s32 1, %v239
    %v241 = vrot.slane %v215, %v240
    %v242 = vmul.f32 %v237, %v232
    %v243 = vmul.f32 %v241, %v233
    %v244 = vadd.f32 %v230, %v242
    %v245 = vadd.f32 %v231, %v243
    %v246 = vld [vmem:[#allocation5 + $0x110] sm:$0xff]
    %v247 = vld [vmem:[#allocation5 + $0x118] sm:$0xff]
    %v248 = vlaneseq
    %v249 = vshrl.u32 %v248, 7
    %v250 = vsub.s32 2, %v249
    %v251 = vrot.slane %v214, %v250
    %v252 = vlaneseq
    %v253 = vshrl.u32 %v252, 7
    %v254 = vsub.s32 2, %v253
    %v255 = vrot.slane %v215, %v254
    %v256 = vmul.f32 %v251, %v246
    %v257 = vmul.f32 %v255, %v247
    %v258 = vadd.f32 %v244, %v256
    %v259 = vadd.f32 %v245, %v257
    %v260 = vld [vmem:[#allocation5 + $0x120] sm:$0xff]
    %v261 = vld [vmem:[#allocation5 + $0x128] sm:$0xff]
    %v262 = vlaneseq
    %v263 = vshrl.u32 %v262, 7
    %v264 = vsub.s32 3, %v263
    %v265 = vrot.slane %v214, %v264
    %v266 = vlaneseq
    %v267 = vshrl.u32 %v266, 7
    %v268 = vsub.s32 3, %v267
    %v269 = vrot.slane %v215, %v268
    %v270 = vmul.f32 %v265, %v260
    %v271 = vmul.f32 %v269, %v261
    %v272 = vadd.f32 %v258, %v270
    %v273 = vadd.f32 %v259, %v271
    %v274 = vld [vmem:[#allocation5 + $0x130] sm:$0xff]
    %v275 = vld [vmem:[#allocation5 + $0x138] sm:$0xff]
    %v276 = vlaneseq
    %v277 = vshrl.u32 %v276, 7
    %v278 = vsub.s32 4, %v277
    %v279 = vrot.slane %v214, %v278
    %v280 = vlaneseq
    %v281 = vshrl.u32 %v280, 7
    %v282 = vsub.s32 4, %v281
    %v283 = vrot.slane %v215, %v282
    %v284 = vmul.f32 %v279, %v274
    %v285 = vmul.f32 %v283, %v275
    %v286 = vadd.f32 %v272, %v284
    %v287 = vadd.f32 %v273, %v285
    %v288 = vld [vmem:[#allocation5 + $0x140] sm:$0xff]
    %v289 = vld [vmem:[#allocation5 + $0x148] sm:$0xff]
    %v290 = vlaneseq
    %v291 = vshrl.u32 %v290, 7
    %v292 = vsub.s32 5, %v291
    %v293 = vrot.slane %v214, %v292
    %v294 = vlaneseq
    %v295 = vshrl.u32 %v294, 7
    %v296 = vsub.s32 5, %v295
    %v297 = vrot.slane %v215, %v296
    %v298 = vmul.f32 %v293, %v288
    %v299 = vmul.f32 %v297, %v289
    %v300 = vadd.f32 %v286, %v298
    %v301 = vadd.f32 %v287, %v299
    %v302 = vld [vmem:[#allocation5 + $0x150] sm:$0xff]
    %v303 = vld [vmem:[#allocation5 + $0x158] sm:$0xff]
    %v304 = vlaneseq
    %v305 = vshrl.u32 %v304, 7
    %v306 = vsub.s32 6, %v305
    %v307 = vrot.slane %v214, %v306
    %v308 = vlaneseq
    %v309 = vshrl.u32 %v308, 7
    %v310 = vsub.s32 6, %v309
    %v311 = vrot.slane %v215, %v310
    %v312 = vmul.f32 %v307, %v302
    %v313 = vmul.f32 %v311, %v303
    %v314 = vadd.f32 %v300, %v312
    %v315 = vadd.f32 %v301, %v313
    %v316 = vld [vmem:[#allocation5 + $0x160] sm:$0xff]
    %v317 = vld [vmem:[#allocation5 + $0x168] sm:$0xff]
    %v318 = vlaneseq
    %v319 = vshrl.u32 %v318, 7
    %v320 = vsub.s32 7, %v319
    %v321 = vrot.slane %v214, %v320
    %v322 = vlaneseq
    %v323 = vshrl.u32 %v322, 7
    %v324 = vsub.s32 7, %v323
    %v325 = vrot.slane %v215, %v324
    %v326 = vmul.f32 %v321, %v316
    %v327 = vmul.f32 %v325, %v317
    %v328 = vadd.f32 %v314, %v326
    %v329 = vadd.f32 %v315, %v327
    %v330 = vadd.f32 %v328, %v38
    %v331 = vadd.f32 %v329, %v39
    %v332 = vlaneseq
    %v333 = vshrl.u32 %v332, 7
    %v334 = vsub.s32 4, %v333
    %v335 = vrot.slane %v38, %v334
    %v336 = vlaneseq
    %v337 = vshrl.u32 %v336, 7
    %v338 = vsub.s32 4, %v337
    %v339 = vrot.slane %v39, %v338
    %v340 = vmul.f32 %v335, %v42
    %v341 = vmul.f32 %v339, %v43
    %v342 = vadd.f32 %v40, %v340
    %v343 = vadd.f32 %v41, %v341
    %v344 = vlaneseq
    %v345 = vshrl.u32 %v344, 7
    %v346 = vsub.s32 5, %v345
    %v347 = vrot.slane %v38, %v346
    %v348 = vlaneseq
    %v349 = vshrl.u32 %v348, 7
    %v350 = vsub.s32 5, %v349
    %v351 = vrot.slane %v39, %v350
    %v352 = vmul.f32 %v347, %v56
    %v353 = vmul.f32 %v351, %v57
    %v354 = vadd.f32 %v342, %v352
    %v355 = vadd.f32 %v343, %v353
    %v356 = vlaneseq
    %v357 = vshrl.u32 %v356, 7
    %v358 = vsub.s32 6, %v357
    %v359 = vrot.slane %v38, %v358
    %v360 = vlaneseq
    %v361 = vshrl.u32 %v360, 7
    %v362 = vsub.s32 6, %v361
    %v363 = vrot.slane %v39, %v362
    %v364 = vmul.f32 %v359, %v70
    %v365 = vmul.f32 %v363, %v71
    %v366 = vadd.f32 %v354, %v364
    %v367 = vadd.f32 %v355, %v365
    %v368 = vlaneseq
    %v369 = vshrl.u32 %v368, 7
    %v370 = vsub.s32 7, %v369
    %v371 = vrot.slane %v38, %v370
    %v372 = vlaneseq
    %v373 = vshrl.u32 %v372, 7
    %v374 = vsub.s32 7, %v373
    %v375 = vrot.slane %v39, %v374
    %v376 = vmul.f32 %v371, %v84
    %v377 = vmul.f32 %v375, %v85
    %v378 = vadd.f32 %v366, %v376
    %v379 = vadd.f32 %v367, %v377
    %v380 = vmax.f32 %v378, 0.0
    %v381 = vmax.f32 %v379, 0.0
    %382 = vrot.lane.b32.xlu0 %v380, 17
    %v383 = vpop.permute.xlu0 %382
    %384 = vrot.lane.b32.xlu0 %v381, 17
    %v385 = vpop.permute.xlu0 %384
    %v386 = vsel %vm108, %v383, %v385
    %v387 = vsel %vm108, %v385, %v383
    %v388 = vmul.f32 %v387, %v111
    %v389 = vmul.f32 %v386, %v112
    %v390 = vadd.f32 %v100, %v388
    %v391 = vadd.f32 %v101, %v389
    %392 = vrot.lane.b32.xlu0 %v380, 16
    %v393 = vpop.permute.xlu0 %392
    %394 = vrot.lane.b32.xlu0 %v381, 16
    %v395 = vpop.permute.xlu0 %394
    %v396 = vsel %vm121, %v393, %v395
    %v397 = vsel %vm121, %v395, %v393
    %v398 = vmul.f32 %v397, %v124
    %v399 = vmul.f32 %v396, %v125
    %v400 = vadd.f32 %v390, %v398
    %v401 = vadd.f32 %v391, %v399
    %402 = vrot.lane.b32.xlu0 %v380, 15
    %v403 = vpop.permute.xlu0 %402
    %404 = vrot.lane.b32.xlu0 %v381, 15
    %v405 = vpop.permute.xlu0 %404
    %v406 = vsel %vm134, %v403, %v405
    %v407 = vsel %vm134, %v405, %v403
    %v408 = vmul.f32 %v407, %v137
    %v409 = vmul.f32 %v406, %v138
    %v410 = vadd.f32 %v400, %v408
    %v411 = vadd.f32 %v401, %v409
    %412 = vrot.lane.b32.xlu0 %v380, 1
    %v413 = vpop.permute.xlu0 %412
    %414 = vrot.lane.b32.xlu0 %v381, 1
    %v415 = vpop.permute.xlu0 %414
    %v416 = vsel %vm147, %v413, %v415
    %v417 = vsel %vm147, %v415, %v413
    %v418 = vmul.f32 %v417, %v150
    %v419 = vmul.f32 %v416, %v151
    %v420 = vadd.f32 %v410, %v418
    %v421 = vadd.f32 %v411, %v419
    %v422 = vmul.f32 %v380, %v156
    %v423 = vmul.f32 %v381, %v157
    %v424 = vadd.f32 %v420, %v422
    %v425 = vadd.f32 %v421, %v423
    %426 = vrot.lane.b32.xlu0 %v380, 127
    %v427 = vpop.permute.xlu0 %426
    %428 = vrot.lane.b32.xlu0 %v381, 127
    %v429 = vpop.permute.xlu0 %428
    %v430 = vsel %vm166, %v427, %v429
    %v431 = vsel %vm166, %v429, %v427
    %v432 = vmul.f32 %v430, %v169
    %v433 = vmul.f32 %v431, %v170
    %v434 = vadd.f32 %v424, %v432
    %v435 = vadd.f32 %v425, %v433
    %436 = vrot.lane.b32.xlu0 %v380, 113
    %v437 = vpop.permute.xlu0 %436
    %438 = vrot.lane.b32.xlu0 %v381, 113
    %v439 = vpop.permute.xlu0 %438
    %v440 = vsel %vm179, %v437, %v439
    %v441 = vsel %vm179, %v439, %v437
    %v442 = vmul.f32 %v440, %v182
    %v443 = vmul.f32 %v441, %v183
    %v444 = vadd.f32 %v434, %v442
    %v445 = vadd.f32 %v435, %v443
    %446 = vrot.lane.b32.xlu0 %v380, 112
    %v447 = vpop.permute.xlu0 %446
    %448 = vrot.lane.b32.xlu0 %v381, 112
    %v449 = vpop.permute.xlu0 %448
    %v450 = vsel %vm192, %v447, %v449
    %v451 = vsel %vm192, %v449, %v447
    %v452 = vmul.f32 %v450, %v195
    %v453 = vmul.f32 %v451, %v196
    %v454 = vadd.f32 %v444, %v452
    %v455 = vadd.f32 %v445, %v453
    %456 = vrot.lane.b32.xlu0 %v380, 111
    %v457 = vpop.permute.xlu0 %456
    %458 = vrot.lane.b32.xlu0 %v381, 111
    %v459 = vpop.permute.xlu0 %458
    %v460 = vsel %vm205, %v457, %v459
    %v461 = vsel %vm205, %v459, %v457
    %v462 = vmul.f32 %v460, %v208
    %v463 = vmul.f32 %v461, %v209
    %v464 = vadd.f32 %v454, %v462
    %v465 = vadd.f32 %v455, %v463
    %v466 = vmax.f32 %v464, 0.0
    %v467 = vmax.f32 %v465, 0.0
    %v468 = vlaneseq
    %v469 = vshrl.u32 %v468, 7
    %v470 = vsub.s32 0, %v469
    %v471 = vrot.slane %v466, %v470
    %v472 = vlaneseq
    %v473 = vshrl.u32 %v472, 7
    %v474 = vsub.s32 0, %v473
    %v475 = vrot.slane %v467, %v474
    %v476 = vmul.f32 %v471, %v218
    %v477 = vmul.f32 %v475, %v219
    %v478 = vadd.f32 %v216, %v476
    %v479 = vadd.f32 %v217, %v477
    %v480 = vlaneseq
    %v481 = vshrl.u32 %v480, 7
    %v482 = vsub.s32 1, %v481
    %v483 = vrot.slane %v466, %v482
    %v484 = vlaneseq
    %v485 = vshrl.u32 %v484, 7
    %v486 = vsub.s32 1, %v485
    %v487 = vrot.slane %v467, %v486
    %v488 = vmul.f32 %v483, %v232
    %v489 = vmul.f32 %v487, %v233
    %v490 = vadd.f32 %v478, %v488
    %v491 = vadd.f32 %v479, %v489
    %v492 = vlaneseq
    %v493 = vshrl.u32 %v492, 7
    %v494 = vsub.s32 2, %v493
    %v495 = vrot.slane %v466, %v494
    %v496 = vlaneseq
    %v497 = vshrl.u32 %v496, 7
    %v498 = vsub.s32 2, %v497
    %v499 = vrot.slane %v467, %v498
    %v500 = vmul.f32 %v495, %v246
    %v501 = vmul.f32 %v499, %v247
    %v502 = vadd.f32 %v490, %v500
    %v503 = vadd.f32 %v491, %v501
    %v504 = vlaneseq
    %v505 = vshrl.u32 %v504, 7
    %v506 = vsub.s32 3, %v505
    %v507 = vrot.slane %v466, %v506
    %v508 = vlaneseq
    %v509 = vshrl.u32 %v508, 7
    %v510 = vsub.s32 3, %v509
    %v511 = vrot.slane %v467, %v510
    %v512 = vmul.f32 %v507, %v260
    %v513 = vmul.f32 %v511, %v261
    %v514 = vadd.f32 %v502, %v512
    %v515 = vadd.f32 %v503, %v513
    %v516 = vlaneseq
    %v517 = vshrl.u32 %v516, 7
    %v518 = vsub.s32 4, %v517
    %v519 = vrot.slane %v466, %v518
    %v520 = vlaneseq
    %v521 = vshrl.u32 %v520, 7
    %v522 = vsub.s32 4, %v521
    %v523 = vrot.slane %v467, %v522
    %v524 = vmul.f32 %v519, %v274
    %v525 = vmul.f32 %v523, %v275
    %v526 = vadd.f32 %v514, %v524
    %v527 = vadd.f32 %v515, %v525
    %v528 = vlaneseq
    %v529 = vshrl.u32 %v528, 7
    %v530 = vsub.s32 5, %v529
    %v531 = vrot.slane %v466, %v530
    %v532 = vlaneseq
    %v533 = vshrl.u32 %v532, 7
    %v534 = vsub.s32 5, %v533
    %v535 = vrot.slane %v467, %v534
    %v536 = vmul.f32 %v531, %v288
    %v537 = vmul.f32 %v535, %v289
    %v538 = vadd.f32 %v526, %v536
    %v539 = vadd.f32 %v527, %v537
    %v540 = vlaneseq
    %v541 = vshrl.u32 %v540, 7
    %v542 = vsub.s32 6, %v541
    %v543 = vrot.slane %v466, %v542
    %v544 = vlaneseq
    %v545 = vshrl.u32 %v544, 7
    %v546 = vsub.s32 6, %v545
    %v547 = vrot.slane %v467, %v546
    %v548 = vmul.f32 %v543, %v302
    %v549 = vmul.f32 %v547, %v303
    %v550 = vadd.f32 %v538, %v548
    %v551 = vadd.f32 %v539, %v549
    %v552 = vlaneseq
    %v553 = vshrl.u32 %v552, 7
    %v554 = vsub.s32 7, %v553
    %v555 = vrot.slane %v466, %v554
    %v556 = vlaneseq
    %v557 = vshrl.u32 %v556, 7
    %v558 = vsub.s32 7, %v557
    %v559 = vrot.slane %v467, %v558
    %v560 = vmul.f32 %v555, %v316
    %v561 = vmul.f32 %v559, %v317
    %v562 = vadd.f32 %v550, %v560
    %v563 = vadd.f32 %v551, %v561
    %v566 = vrot.slane %v38, 4
    %v567 = vrot.slane %v39, 4
    %v570 = vadd.f32 %v562, %v566
    %v571 = vadd.f32 %v563, %v567
    %v574 = vrot.slane %v570, 4
    %v575 = vrot.slane %v571, 4
    %vm578 = vcmask 1043456
    %v579 = vsel %vm578, %v330, %v574
    %v580 = vsel %vm578, %v331, %v575
    %581 = vst [vmem:[#allocation7] sm:$0xff] %v579
    %582 = vst [vmem:[#allocation7 + $0x8] sm:$0xff] %v580
    // Predicated region
    $region18: #{tpu_custom_call.1} parent=1 // pred_check
      _
    $region19: #{tpu_custom_call.1} parent=1 // pred_check_branch
      %584 = sbr.rel (0) target = $region21
    $region20: #{tpu_custom_call.1} parent=1 // pred_region
      %s586 = ssub.s32 256, 256
      %587 = vsyncadd [#allocation4], %s586
      %s589 = sshll.u32 [#allocation7], 4
      %s590 = int_to_ptr.vmem [resolvable:$true] %s589
      %592 = dma.vmem_to_hbm [thread:$0]  %s590, 256, %s2, [#allocation4]
    $region21: #{tpu_custom_call.1} parent=1 // pred_fallthru
      _
    // Predicated region
    $region22: #{tpu_custom_call.1} parent=1 // pred_check
      _
    $region23: #{tpu_custom_call.1} parent=1 // pred_check_branch
      %594 = sbr.rel (0) target = $region25
    $region24: #{tpu_custom_call.1} parent=1 // pred_region
      %595 = dma.done [#allocation4], 256
    $region25: #{tpu_custom_call.1} parent=1 // pred_fallthru
      _
    %596 = vsyncpa [#allocation3], 1
    %597 = vsyncpa [#allocation6], 1
    %598 = vsyncpa [#allocation4], 1

</llo_original>
